<compile_context>
chip_gen: v5e
topology: v5e:2x2
jax: 0.10.0
libtpu: 0.0.40
codegen_flags: <defaults>
</compile_context>

<pallas_src>
import functools

import jax
import jax.numpy as jnp
from jax import lax
from jax.experimental import pallas as pl
from jax.experimental.pallas import tpu as pltpu

_LANES = 128


def _round_up(x, m):
    return ((x + m - 1) // m) * m


def _sublane_multiple(dtype):
    # Minimum sublane packing: f32 -> 8, bf16/f16 -> 16, int8/fp8 -> 32.
    return {4: 8, 2: 16, 1: 32}.get(jnp.dtype(dtype).itemsize, 8)


def _tpu_kind():
    try:
        return jax.devices()[0].device_kind.lower()
    except Exception:
        return ""


def _rmse_partial_kernel(t_ref, p_ref, o_ref, acc_ref, *,
                         rows, row_block, inner_steps, last_block,
                         acc_rows, needs_mask):
    c = pl.program_id(0)   # split ("parallel") axis
    i = pl.program_id(1)   # row-block ("arbitrary" / reduction) axis

    @pl.when(i == 0)
    def _():
        acc_ref[...] = jnp.zeros_like(acc_ref)

    block_idx = c * inner_steps + i

    def accumulate(mask_rows):
        d = t_ref[...].astype(jnp.float32) - p_ref[...].astype(jnp.float32)
        if mask_rows:
            # Row-granular mask: rows past the logical end (partial last block
            # or clamped overshoot steps) contribute zero.  Lane padding is
            # already zeros, so no per-element index is needed.
            base_row = block_idx * row_block
            row_ids = lax.broadcasted_iota(jnp.int32, (row_block, _LANES), 0)
            d = jnp.where(base_row + row_ids < rows, d, jnp.float32(0.0))
        sq = d * d
        # Fold rows into a wide (acc_rows, 128) accumulator: several
        # independent VPU add chains, no per-step cross-lane reduce.
        acc_ref[...] += jnp.sum(
            sq.reshape(row_block // acc_rows, acc_rows, _LANES), axis=0)

    if needs_mask:
        # Mask only on the last real block and on clamped overshoot steps;
        # every interior step takes the mask-free path.
        @pl.when(block_idx >= last_block)
        def _():
            accumulate(True)

        @pl.when(block_idx < last_block)
        def _():
            accumulate(False)
    else:
        accumulate(False)

    @pl.when(i == inner_steps - 1)
    def _():
        o_ref[0, 0] = jnp.sum(acc_ref[...])


def rmse_loss(target, pred, *, eps=1e-12):
    assert target.shape == pred.shape, "target/pred shapes must match"
    n = target.size
    assert n > 0, "empty input"
    out_dtype = (target.dtype if jnp.issubdtype(target.dtype, jnp.floating)
                 else jnp.float32)

    # Flatten in native dtype (free); cast to f32 happens inside the kernel.
    t_flat = jnp.ravel(target)
    p_flat = jnp.ravel(pred)

    rows = pl.cdiv(n, _LANES)
    lane_pad = rows * _LANES - n
    if lane_pad:
        # Ragged lane tail: pad with zeros so the reshape below is valid.
        # Zero-padded lanes contribute (0-0)^2 = 0, so no mask is needed for
        # them.  Common shapes (n % 128 == 0) take the zero-copy path.
        t_flat = jnp.pad(t_flat, (0, lane_pad))
        p_flat = jnp.pad(p_flat, (0, lane_pad))

    t2 = t_flat.reshape(rows, _LANES)
    p2 = p_flat.reshape(rows, _LANES)

    # Per-generation tuning: only v7x has 2 TensorCores per chip, and its
    # 3.2 TB/s HBM wants larger blocks to amortize the fixed step overhead.
    kind = _tpu_kind()
    is_v7 = "v7" in kind
    num_splits_target = 2 if is_v7 else 1
    base_rows = 4096 if is_v7 else 1024

    itemsize = max(jnp.dtype(target.dtype).itemsize,
                   jnp.dtype(pred.dtype).itemsize)
    dtype_scale = max(1, 4 // max(1, itemsize))   # keep DMA bytes/step constant
    max_row_block = base_rows * dtype_scale

    sub = max(_sublane_multiple(target.dtype), _sublane_multiple(pred.dtype))
    row_block = min(max_row_block, _round_up(rows, sub))
    total_blocks = pl.cdiv(rows, row_block)
    n_splits = num_splits_target if total_blocks >= num_splits_target else 1
    inner_steps = pl.cdiv(total_blocks, n_splits)

    # Clamp block indices only if the rectangular grid overshoots the blocks
    # (the overshot iterations re-read the last block and are fully masked).
    clamp_needed = (n_splits * inner_steps) != total_blocks
    # Mask only when the loaded rows overrun the real row count (partial last
    # block or overshoot).  The lane tail never needs masking (zero-padded).
    needs_mask = (rows % row_block != 0) or clamp_needed
    last_block = total_blocks - 1

    # Widest accumulator whose row count divides row_block (row_block is a
    # multiple of the sublane packing, i.e. of 8).
    acc_rows = 32 if row_block % 32 == 0 else (16 if row_block % 16 == 0 else 8)

    if clamp_needed:
        def in_index_map(c, i):
            return (jnp.minimum(c * inner_steps + i, last_block), 0)
    else:
        def in_index_map(c, i):
            return (c * inner_steps + i, 0)

    kernel = functools.partial(
        _rmse_partial_kernel,
        rows=rows,
        row_block=row_block,
        inner_steps=inner_steps,
        last_block=last_block,
        acc_rows=acc_rows,
        needs_mask=needs_mask,
    )

    bytes_in = n * (jnp.dtype(target.dtype).itemsize
                    + jnp.dtype(pred.dtype).itemsize)

    # TODO(synk): if an xprof trace on v7x shows exposed DMA between steps,
    # add pipeline_mode=pl.Buffered(3) to the two input BlockSpecs.
    partial_sums = pl.pallas_call(
        kernel,
        out_shape=jax.ShapeDtypeStruct((n_splits, 1), jnp.float32),
        grid_spec=pltpu.PrefetchScalarGridSpec(
            num_scalar_prefetch=0,
            grid=(n_splits, inner_steps),
            in_specs=[
                pl.BlockSpec((row_block, _LANES), in_index_map),
                pl.BlockSpec((row_block, _LANES), in_index_map),
            ],
            out_specs=pl.BlockSpec((1, 1), lambda c, i: (c, 0),
                                   memory_space=pltpu.MemorySpace.SMEM),
            scratch_shapes=[pltpu.VMEM((acc_rows, _LANES), jnp.float32)],
        ),
        compiler_params=pltpu.CompilerParams(
            dimension_semantics=("parallel", "arbitrary"),
            vmem_limit_bytes=32 * 1024 * 1024,
        ),
        cost_estimate=pl.CostEstimate(
            flops=3 * n, transcendentals=0,
            bytes_accessed=bytes_in + 4 * n_splits),
    )(t2, p2)

    total = jnp.sum(partial_sums)
    mse = total / jnp.float32(n)
    return jnp.sqrt(mse + jnp.float32(eps)).astype(out_dtype)


if __name__ == "__main__":
    key = jax.random.PRNGKey(0)
    k1, k2, k3, k4 = jax.random.split(key, 4)

    # NCHW-like shapes, as the PyTorch module would typically see.
    target = jax.random.normal(k1, (2, 4, 16, 16), dtype=jnp.float32)
    pred = jax.random.normal(k2, (2, 4, 16, 16), dtype=jnp.float32)

    loss = rmse_loss(target, pred)
    jax.block_until_ready(loss)
    ref = jnp.sqrt(jnp.mean((target - pred) ** 2) + 1e-12)
    assert jnp.allclose(loss, ref, rtol=1e-5, atol=1e-6), (loss, ref)

    # Ragged shape (exercises the lane-pad + row-mask path).
    t_r = jax.random.normal(k3, (2, 3, 5, 7), dtype=jnp.float32)
    p_r = jax.random.normal(k4, (2, 3, 5, 7), dtype=jnp.float32)
    loss_r = rmse_loss(t_r, p_r)
    jax.block_until_ready(loss_r)
    ref_r = jnp.sqrt(jnp.mean((t_r - p_r) ** 2) + 1e-12)
    assert jnp.allclose(loss_r, ref_r, rtol=1e-5, atol=1e-6), (loss_r, ref_r)

    print("KERNEL_OK")
</pallas_src>

<mosaic_0001>
module attributes {stable_mosaic.version = 11 : i64} {
  func.func @_rmse_partial_kernel(%arg0: i32, %arg1: i32, %arg2: memref<16x128xf32, #tpu.memory_space<vmem>>, %arg3: memref<16x128xf32, #tpu.memory_space<vmem>>, %arg4: memref<1x1xf32, #tpu.memory_space<smem>>, %arg5: memref<16x128xf32, #tpu.memory_space<vmem>>) attributes {dimension_semantics = [#tpu.dimension_semantics<parallel>, #tpu.dimension_semantics<arbitrary>], iteration_bounds = array<i64: 1, 1>, scalar_prefetch = 0 : i64, scratch_operands = 1 : i64, tpu.core_type = #tpu.core_type<tc>, window_params = [{transform_indices = @transform_0, window_bounds = array<i64: 16, 128>}, {transform_indices = @transform_1, window_bounds = array<i64: 16, 128>}, {transform_indices = @transform_2, window_bounds = array<i64: 1, 1>}]} {
    %c0_i32 = arith.constant 0 : i32
    %0 = arith.cmpi eq, %arg1, %c0_i32 : i32
    %1 = arith.extui %0 : i1 to i32
    %c0_i32_0 = arith.constant 0 : i32
    %2 = arith.cmpi ne, %1, %c0_i32_0 : i32
    scf.if %2 {
      %cst_10 = arith.constant 0.000000e+00 : f32
      %15 = vector.broadcast %cst_10 : f32 to vector<16x128xf32>
      %c0_11 = arith.constant 0 : index
      %c0_12 = arith.constant 0 : index
      %16 = vector.load %arg5[%c0_11, %c0_12] : memref<16x128xf32, #tpu.memory_space<vmem>>, vector<16x128xf32>
      tpu.vector_store %arg5[%c0_11, %c0_12], %15 {strides = array<i32>} : memref<16x128xf32, #tpu.memory_space<vmem>>, vector<16x128xf32>,
    } else {
    }
    %c0 = arith.constant 0 : index
    %c0_1 = arith.constant 0 : index
    %3 = vector.load %arg2[%c0, %c0_1] : memref<16x128xf32, #tpu.memory_space<vmem>>, vector<16x128xf32>
    %c0_2 = arith.constant 0 : index
    %c0_3 = arith.constant 0 : index
    %4 = vector.load %arg3[%c0_2, %c0_3] : memref<16x128xf32, #tpu.memory_space<vmem>>, vector<16x128xf32>
    %5 = arith.subf %3, %4 : vector<16x128xf32>
    %6 = arith.mulf %5, %5 : vector<16x128xf32>
    %c0_4 = arith.constant 0 : index
    %c0_5 = arith.constant 0 : index
    %7 = vector.load %arg5[%c0_4, %c0_5] : memref<16x128xf32, #tpu.memory_space<vmem>>, vector<16x128xf32>
    %8 = vector.shape_cast %6 : vector<16x128xf32> to vector<1x16x128xf32>
    %cst = arith.constant dense<0.000000e+00> : vector<16x128xf32>
    %9 = vector.multi_reduction <add>, %8, %cst [0] : vector<1x16x128xf32> to vector<16x128xf32>
    %10 = arith.addf %7, %9 : vector<16x128xf32>
    %c0_6 = arith.constant 0 : index
    %c0_7 = arith.constant 0 : index
    %11 = vector.load %arg5[%c0_6, %c0_7] : memref<16x128xf32, #tpu.memory_space<vmem>>, vector<16x128xf32>
    tpu.vector_store %arg5[%c0_6, %c0_7], %10 {strides = array<i32>} : memref<16x128xf32, #tpu.memory_space<vmem>>, vector<16x128xf32>,
    %c0_i32_8 = arith.constant 0 : i32
    %12 = arith.cmpi eq, %arg1, %c0_i32_8 : i32
    %13 = arith.extui %12 : i1 to i32
    %c0_i32_9 = arith.constant 0 : i32
    %14 = arith.cmpi ne, %13, %c0_i32_9 : i32
    scf.if %14 {
      %c0_10 = arith.constant 0 : index
      %c0_11 = arith.constant 0 : index
      %15 = vector.load %arg5[%c0_10, %c0_11] : memref<16x128xf32, #tpu.memory_space<vmem>>, vector<16x128xf32>
      %16 = vector.shape_cast %15 : vector<16x128xf32> to vector<1x16x128xf32>
      %cst_12 = arith.constant dense<0.000000e+00> : vector<1xf32>
      %17 = vector.multi_reduction <add>, %16, %cst_12 [1, 2] : vector<1x16x128xf32> to vector<1xf32>
      %18 = vector.shape_cast %17 : vector<1xf32> to vector<1x1x1xf32>
      %19 = vector.extract %18[0, 0, 0] : f32 from vector<1x1x1xf32>
      %c0_13 = arith.constant 0 : index
      %c0_14 = arith.constant 0 : index
      %20 = memref.load %arg4[%c0_13, %c0_14] : memref<1x1xf32, #tpu.memory_space<smem>>
      memref.store %19, %arg4[%c0_13, %c0_14] : memref<1x1xf32, #tpu.memory_space<smem>>
    } else {
    }
    return
  }
  func.func @transform_0(%arg0: i32, %arg1: i32) -> (i32, i32) {
    %c1_i32 = arith.constant 1 : i32
    %0 = arith.muli %arg0, %c1_i32 : i32
    %1 = arith.addi %0, %arg1 : i32
    %c0_i32 = arith.constant 0 : i32
    %c0_i32_0 = arith.constant 0 : i32
    return %1, %c0_i32 : i32, i32
  }
  func.func @transform_1(%arg0: i32, %arg1: i32) -> (i32, i32) {
    %c1_i32 = arith.constant 1 : i32
    %0 = arith.muli %arg0, %c1_i32 : i32
    %1 = arith.addi %0, %arg1 : i32
    %c0_i32 = arith.constant 0 : i32
    %c0_i32_0 = arith.constant 0 : i32
    return %1, %c0_i32 : i32, i32
  }
  func.func @transform_2(%arg0: i32, %arg1: i32) -> (i32, i32) {
    %c0_i32 = arith.constant 0 : i32
    %c0_i32_0 = arith.constant 0 : i32
    return %arg0, %c0_i32 : i32, i32
  }
}

</mosaic_0001>

<llo_original>
// kernel: tpu_custom_call.1
$region0: #{tpu_custom_call.1}
  #allocation0 [shape = 'u32[]', space=smem, size = 0x4, offset = 0x4, fixed_abs, tag = 'smem constant byte address 0x4 - core index']
  #allocation1 [shape = 'u32[72,128]{1,0:T(1,128)}', space=vmem, size = 0x9000, scoped, tag = 'internal scratch']
  #allocation2 [shape = 'f32[16,128]{1,0:T(8,128)}', space=vmem, size = 0x2000, scoped, tag = 'scratch operand']
  %s0 = inlined_call_operand.hbm [shape: f32[16,128], index: 0, kind: input, shape index: {}]
  %s1 = inlined_call_operand.hbm [shape: f32[16,128], index: 1, kind: input, shape index: {}]
  %s2 = inlined_call_operand.hbm [shape: f32[1,1], index: 2, kind: output, shape index: {}]
  %s3 = sld [smem:[#allocation0]]
  $region34: #{tpu_custom_call.1} parent=0
    _
  %s5 = ssub.s32 1, %s3
  %s6 = scalar_select 0, %s5, %s3
  $region1: #{tpu_custom_call.1} parent=0
    #allocation3 [shape = 'u8[8192]{0}', space=vmem, size = 0x2000, scoped, tag = 'input window, operand 0, single buffered']
    #allocation4 [shape = 's32[1]{0}', space=sflag, size = 0x4, scoped, tag = 'scoped memory for tpu_custom_call.1']
    #allocation5 [shape = 's32[1]{0}', space=sflag, size = 0x4, scoped, tag = 'scoped memory for tpu_custom_call.1']
    #allocation6 [shape = 'u8[8192]{0}', space=vmem, size = 0x2000, scoped, tag = 'input window, operand 1, single buffered']
    #allocation7 [shape = 's32[1]{0}', space=sflag, size = 0x4, scoped, tag = 'scoped memory for tpu_custom_call.1']
    #allocation8 [shape = 'u8[512]{0}', space=smem, size = 0x200, scoped, tag = 'output window, operand 0, single buffered']
    %7 = vsyncpa [#allocation4], 0
    %8 = vsyncpa [#allocation7], 0
    %9 = vsyncpa [#allocation5], 0
    // Predicated region
    $region2: #{tpu_custom_call.1} parent=1 // pred_check
      _
    $region3: #{tpu_custom_call.1} parent=1 // pred_check_branch
      %11 = sbr.rel (0) target = $region5
    $region4: #{tpu_custom_call.1} parent=1 // pred_region
      %s12 = sadd.s32 0, 0
      %s13 = smul.u32 2, %s12
      %15 = vsyncadd [#allocation4], 0
      %s16 = smul.addr %s13, 8
      %s17 = scalar_lea.hbm %s0, %s16
      %s18 = sshll.u32 %s17, 4
      %s19 = int_to_ptr.hbm [resolvable:$true] %s18
      %s20 = sshll.u32 [#allocation3], 4
      %s21 = int_to_ptr.vmem [resolvable:$true] %s20
      %26 = dma.hbm_to_vmem [thread:$0]  %s19, 256, %s21, [#allocation4], 128, 128, 8
    $region5: #{tpu_custom_call.1} parent=1 // pred_fallthru
      _
    // Predicated region
    $region6: #{tpu_custom_call.1} parent=1 // pred_check
      _
    $region7: #{tpu_custom_call.1} parent=1 // pred_check_branch
      %28 = sbr.rel (0) target = $region9
    $region8: #{tpu_custom_call.1} parent=1 // pred_region
      %s29 = sadd.s32 0, 0
      %s30 = smul.u32 2, %s29
      %32 = vsyncadd [#allocation7], 0
      %s33 = smul.addr %s30, 8
      %s34 = scalar_lea.hbm %s1, %s33
      %s35 = sshll.u32 %s34, 4
      %s36 = int_to_ptr.hbm [resolvable:$true] %s35
      %s37 = sshll.u32 [#allocation6], 4
      %s38 = int_to_ptr.vmem [resolvable:$true] %s37
      %43 = dma.hbm_to_vmem [thread:$0]  %s36, 256, %s38, [#allocation7], 128, 128, 8
    $region9: #{tpu_custom_call.1} parent=1 // pred_fallthru
      _
    // Predicated region
    $region10: #{tpu_custom_call.1} parent=1 // pred_check
      _
    $region11: #{tpu_custom_call.1} parent=1 // pred_check_branch
      %45 = sbr.rel (0) target = $region13
    $region12: #{tpu_custom_call.1} parent=1 // pred_region
      %47 = dma.done [#allocation4], 256
    $region13: #{tpu_custom_call.1} parent=1 // pred_fallthru
      _
    // Predicated region
    $region14: #{tpu_custom_call.1} parent=1 // pred_check
      _
    $region15: #{tpu_custom_call.1} parent=1 // pred_check_branch
      %49 = sbr.rel (0) target = $region17
    $region16: #{tpu_custom_call.1} parent=1 // pred_region
      %51 = dma.done [#allocation7], 256
    $region17: #{tpu_custom_call.1} parent=1 // pred_fallthru
      _
    %s52 = sadd.s32 0, 0
    %s53 = smul.u32 2, %s52
    %s54 = sadd.s32 0, 0
    %s55 = smul.u32 2, %s54
    %p56 = scmp.eq.s32.totalorder 0, 0
    // Predicated region
    $region18: #{tpu_custom_call.1} parent=1 // pred_check
      %p57 = pneg %p56
    $region19: #{tpu_custom_call.1} parent=1 // pred_check_branch
      %59 = sbr.rel (%p57) target = $region21
    $region20: #{tpu_custom_call.1} parent=1 // pred_region
      %60 = vst [vmem:[#allocation2] sm:$0xff] 0.0
      %61 = vst [vmem:[#allocation2 + $0x8] sm:$0xff] 0.0
    $region21: #{tpu_custom_call.1} parent=1 // pred_fallthru
      _
    %v62 = vld [vmem:[#allocation3] sm:$0xff]
    %v63 = vld [vmem:[#allocation3 + $0x8] sm:$0xff]
    %v64 = vld [vmem:[#allocation6] sm:$0xff]
    %v65 = vld [vmem:[#allocation6 + $0x8] sm:$0xff]
    %v66 = vsub.f32 %v62, %v64
    %v67 = vsub.f32 %v63, %v65
    %v68 = vmul.f32 %v66, %v66
    %v69 = vmul.f32 %v67, %v67
    %v70 = vld [vmem:[#allocation2] sm:$0xff]
    %v71 = vld [vmem:[#allocation2 + $0x8] sm:$0xff]
    %v72 = vadd.f32 %v68, 0.0
    %v73 = vadd.f32 %v69, 0.0
    %v74 = vadd.f32 %v70, %v72
    %v75 = vadd.f32 %v71, %v73
    %76 = vst [vmem:[#allocation2] sm:$0xff] %v74
    %77 = vst [vmem:[#allocation2 + $0x8] sm:$0xff] %v75
    // Predicated region
    $region22: #{tpu_custom_call.1} parent=1 // pred_check
      %p78 = pneg %p56
    $region23: #{tpu_custom_call.1} parent=1 // pred_check_branch
      %80 = sbr.rel (%p78) target = $region25
    $region24: #{tpu_custom_call.1} parent=1 // pred_region
      %v81 = vld [vmem:[#allocation2] sm:$0xff]
      %v82 = vld [vmem:[#allocation2 + $0x8] sm:$0xff]
      %v83 = vadd.f32 %v81, %v82
      %84 = vadd.xlane.f32.xlu0 %v83
      %v85 = vpop.xlane.xlu0 %84
      %v86 = vrot.slane %v85, 4
      %v87 = vadd.f32 %v85, %v86
      %v88 = vrot.slane %v87, 2
      %v89 = vadd.f32 %v87, %v88
      %v90 = vrot.slane %v89, 1
      %v91 = vadd.f32 %v89, %v90
      %s92 = vtos %v91
      %s93 = scalar_lea.smem [#allocation8], 0
      %94 = sst [smem:[%s93]] %s92
    $region25: #{tpu_custom_call.1} parent=1 // pred_fallthru
      _
    // Predicated region
    $region26: #{tpu_custom_call.1} parent=1 // pred_check
      _
    $region27: #{tpu_custom_call.1} parent=1 // pred_check_branch
      %96 = sbr.rel (0) target = $region29
    $region28: #{tpu_custom_call.1} parent=1 // pred_region
      %98 = vsyncadd [#allocation5], 0
      %s100 = sshll.u32 %s2, 4
      %s101 = int_to_ptr.hbm [resolvable:$true] %s100
      %103 = dma.smem_to_hbm [#allocation8], 16, %s101, [#allocation5]
    $region29: #{tpu_custom_call.1} parent=1 // pred_fallthru
      _
    // Predicated region
    $region30: #{tpu_custom_call.1} parent=1 // pred_check
      _
    $region31: #{tpu_custom_call.1} parent=1 // pred_check_branch
      %105 = sbr.rel (0) target = $region33
    $region32: #{tpu_custom_call.1} parent=1 // pred_region
      %107 = dma.done [#allocation5], 16
    $region33: #{tpu_custom_call.1} parent=1 // pred_fallthru
      _
    %108 = sfence
    %109 = vsyncpa [#allocation4], 1
    %110 = vsyncpa [#allocation7], 1
    %111 = vsyncpa [#allocation5], 1

</llo_original>
